<compile_context>
chip_gen: v5e
topology: v5e:2x2
jax: 0.10.0
libtpu: 0.0.40
codegen_flags: <defaults>
</compile_context>

<pallas_src>
import functools

import jax
import jax.numpy as jnp
from jax.experimental import pallas as pl
from jax.experimental.pallas import tpu as pltpu

_LANE = 128
_MAX_BATCH_TILE = 4096
_VMEM_FALLBACK_BYTES = 64 * 1024 * 1024  # assume the smallest (v7x) part


def _round_up(n, m):
    return ((n + m - 1) // m) * m


def _pad2(a, rows, cols):
    r, c = a.shape
    if (r, c) == (rows, cols):
        return a
    return jnp.pad(a, ((0, rows - r), (0, cols - c)))


@functools.lru_cache(maxsize=1)
def _vmem_budget_bytes():
    """Generation-aware VMEM budget: 75% of physical VMEM (128 MiB on v5e/v6e,
    64 MiB on v7x).  Falls back to the smallest generation if the query fails."""
    try:
        cap = int(pltpu.get_tpu_info().vmem_capacity_bytes)
    except Exception:  # capability query only; the real kernel never retries
        cap = _VMEM_FALLBACK_BYTES
    return (3 * cap) // 4


@functools.lru_cache(maxsize=1)
def _single_buffer_weights_supported():
    """One-time tiny probe: does this JAX build accept pl.Buffered(1) for
    grid-invariant inputs (single VMEM copy of each weight)?"""
    def probe_kernel(x_ref, w_ref, o_ref):
        o_ref[...] = x_ref[...] + w_ref[...]

    try:
        f = pl.pallas_call(
            probe_kernel,
            out_shape=jax.ShapeDtypeStruct((16, _LANE), jnp.float32),
            grid_spec=pltpu.PrefetchScalarGridSpec(
                num_scalar_prefetch=0,
                grid=(2,),
                in_specs=[
                    pl.BlockSpec((8, _LANE), lambda i: (i, 0)),
                    pl.BlockSpec((8, _LANE), lambda i: (0, 0),
                                 pipeline_mode=pl.Buffered(1)),
                ],
                out_specs=pl.BlockSpec((8, _LANE), lambda i: (i, 0)),
            ),
        )
        jax.block_until_ready(
            f(jnp.zeros((16, _LANE), jnp.float32),
              jnp.ones((8, _LANE), jnp.float32)))
        return True
    except Exception:  # tiny probe only — the real kernel path has no retry
        return False


def _shared_net_kernel(x_ref, w1_ref, b1_ref, w2_ref, b2_ref, w3_ref, b3_ref,
                       o_ref):
    """Fused fc1->relu->fc2->relu->fc3->relu on one (tb, D) batch tile."""
    cdt = w1_ref.dtype
    x = x_ref[...].astype(cdt)  # in-kernel cast: VPU work hidden under the MXU
    h = jnp.dot(x, w1_ref[...], preferred_element_type=jnp.float32)
    h = jnp.maximum(h + b1_ref[...], 0.0)

    h = jnp.dot(h.astype(cdt), w2_ref[...], preferred_element_type=jnp.float32)
    h = jnp.maximum(h + b2_ref[...], 0.0)

    h = jnp.dot(h.astype(cdt), w3_ref[...], preferred_element_type=jnp.float32)
    h = jnp.maximum(h + b3_ref[...], 0.0)

    o_ref[...] = h.astype(o_ref.dtype)


def shared_network_forward(x, params, *, batch_tile=None,
                           compute_dtype=jnp.bfloat16,
                           out_dtype=jnp.float32):
    """SharedNetwork forward via one fused Pallas kernel.

    Args:
      x: (batch, input_dim) array (kept untouched in HBM; cast in-kernel).
      params: dict with w1 (D,H), b1 (1,H), w2 (H,H), b2 (1,H), w3 (H,H),
        b3 (1,H); weights stored (in, out) so the kernel computes x @ W + b.
      batch_tile: optional cap on rows per grid step (rounded to alignment).
      compute_dtype: matmul operand dtype (bf16 default; accumulation is f32).
      out_dtype: output store dtype (f32 default).
    """
    B, D = x.shape
    H = params["w1"].shape[1]
    Hp = _round_up(H, _LANE)   # lane-dense hidden dim -> unmasked output vst
    Dl = _round_up(D, _LANE)   # VMEM lane footprint of the x tile

    op_bytes = jnp.dtype(compute_dtype).itemsize
    out_bytes = jnp.dtype(out_dtype).itemsize
    x_bytes = jnp.dtype(x.dtype).itemsize
    row_align = 16 if op_bytes < 4 else 8  # bf16 packs 16 rows per vreg

    budget = _vmem_budget_bytes()
    single_buf = _single_buffer_weights_supported()

    # --- VMEM estimate consistent with the buffering actually used ----------
    w_bufs = 1 if single_buf else 2
    weight_bytes = w_bufs * ((D * Hp + 2 * Hp * Hp) * op_bytes + 3 * Hp * 4)
    # double-buffered x / out tiles + in-kernel intermediates, per batch row:
    per_row_bytes = (2 * Dl * x_bytes + 2 * Hp * out_bytes
                     + Dl * op_bytes + 3 * Hp * 4 + 2 * Hp * op_bytes)
    if weight_bytes + row_align * per_row_bytes > budget:
        # TODO(synk): tile w2/w3 over output-feature column blocks (inner
        # pltpu.emit_pipeline) so hidden_dim beyond ~3k fits v7x's 64 MiB VMEM.
        raise ValueError(
            f"hidden_dim={H} too large for resident weights in "
            f"{budget // (1024 * 1024)} MiB of VMEM")

    # --- batch tile: grow to fill the budget, then apply caps ---------------
    tb = ((budget - weight_bytes) // per_row_bytes // row_align) * row_align
    tb = min(tb, _MAX_BATCH_TILE)
    if batch_tile is not None:
        tb = min(tb, _round_up(int(batch_tile), row_align))
    if B >= 1024:
        # keep >= 2 grid steps so both v7x TensorCores / the pipeline get work
        tb = min(tb, _round_up(pl.cdiv(B, 2), row_align))
    tb = min(tb, _round_up(B, row_align))
    tb = max(tb, row_align)
    grid = (pl.cdiv(B, tb),)  # ragged last tile: OOB rows are dropped

    # --- weights: pad hidden dim to lane-dense, cast to compute dtype -------
    w1 = _pad2(params["w1"], D, Hp).astype(compute_dtype)
    w2 = _pad2(params["w2"], Hp, Hp).astype(compute_dtype)
    w3 = _pad2(params["w3"], Hp, Hp).astype(compute_dtype)
    b1 = _pad2(params["b1"], 1, Hp).astype(jnp.float32)
    b2 = _pad2(params["b2"], 1, Hp).astype(jnp.float32)
    b3 = _pad2(params["b3"], 1, Hp).astype(jnp.float32)

    rep = lambda i: (0, 0)  # grid-invariant blocks (weights / biases)
    if single_buf:
        wspec = lambda shape: pl.BlockSpec(shape, rep,
                                           pipeline_mode=pl.Buffered(1))
    else:
        wspec = lambda shape: pl.BlockSpec(shape, rep)

    out = pl.pallas_call(
        _shared_net_kernel,
        out_shape=jax.ShapeDtypeStruct((B, Hp), out_dtype),
        grid_spec=pltpu.PrefetchScalarGridSpec(
            num_scalar_prefetch=0,
            grid=grid,
            in_specs=[
                pl.BlockSpec((tb, D), lambda i: (i, 0)),  # x tile (full-D block)
                wspec((D, Hp)),                            # w1
                wspec((1, Hp)),                            # b1
                wspec((Hp, Hp)),                           # w2
                wspec((1, Hp)),                            # b2
                wspec((Hp, Hp)),                           # w3
                wspec((1, Hp)),                            # b3
            ],
            out_specs=pl.BlockSpec((tb, Hp), lambda i: (i, 0)),
        ),
        compiler_params=pltpu.CompilerParams(
            dimension_semantics=("parallel",),
            vmem_limit_bytes=int(budget),
        ),
    )(x, w1, b1, w2, b2, w3, b3)

    return out if Hp == H else out[:, :H]


def init_shared_network_params(key, input_dim, hidden_dim):
    """Orthogonal init (gain=sqrt(2)), zero biases — matches BaseNetwork."""
    k1, k2, k3 = jax.random.split(key, 3)
    gain = float(jnp.sqrt(2.0))
    ortho = jax.nn.initializers.orthogonal()

    def make_linear(k, fan_in, fan_out):
        # nn.Linear stores (out, in); we keep the transposed (in, out) layout
        # so the kernel computes x @ W directly.
        w = gain * ortho(k, (fan_in, fan_out), jnp.float32)
        b = jnp.zeros((1, fan_out), jnp.float32)
        return w, b

    w1, b1 = make_linear(k1, input_dim, hidden_dim)
    w2, b2 = make_linear(k2, hidden_dim, hidden_dim)
    w3, b3 = make_linear(k3, hidden_dim, hidden_dim)
    return {"w1": w1, "b1": b1, "w2": w2, "b2": b2, "w3": w3, "b3": b3}


def _reference_forward(x, p):
    h = jax.nn.relu(x @ p["w1"] + p["b1"])
    h = jax.nn.relu(h @ p["w2"] + p["b2"])
    h = jax.nn.relu(h @ p["w3"] + p["b3"])
    return h


if __name__ == "__main__":
    key = jax.random.PRNGKey(0)
    k_param, k_x, k_param2, k_x2 = jax.random.split(key, 4)

    # Small shapes consistent with SharedNetwork(input_dim, hidden_dim).
    batch, input_dim, hidden_dim = 12, 24, 32
    params = init_shared_network_params(k_param, input_dim, hidden_dim)
    x = jax.random.normal(k_x, (batch, input_dim), jnp.float32)
    ref = _reference_forward(x, params)

    # 1) Default path: bf16 operands / f32 accumulation, single grid step,
    #    ragged input_dim (24) and padded hidden_dim (32 -> 128).
    out = jax.block_until_ready(shared_network_forward(x, params))
    assert out.shape == (batch, hidden_dim)
    assert jnp.allclose(out, ref, atol=5e-2, rtol=5e-2), "bf16 path mismatch"

    # 2) f32 operands, forced tiny batch tile -> multi-step grid with a ragged
    #    last batch tile (12 rows, tb=8 -> grid of 2). Tight tolerance.
    out_f32 = jax.block_until_ready(
        shared_network_forward(x, params, batch_tile=8,
                               compute_dtype=jnp.float32))
    assert out_f32.shape == (batch, hidden_dim)
    assert jnp.allclose(out_f32, ref, atol=1e-4, rtol=1e-4), "f32 path mismatch"

    # 3) Lane-aligned feature dims (no padding at all), multi-step bf16 grid.
    b2_, d2_, h2_ = 40, 128, 256
    params2 = init_shared_network_params(k_param2, d2_, h2_)
    x2 = jax.random.normal(k_x2, (b2_, d2_), jnp.float32)
    ref2 = _reference_forward(x2, params2)
    out2 = jax.block_until_ready(
        shared_network_forward(x2, params2, batch_tile=16))
    assert out2.shape == (b2_, h2_)
    assert jnp.allclose(out2, ref2, atol=5e-2, rtol=5e-2), "tiled bf16 mismatch"

    print("KERNEL_OK")
</pallas_src>

<mosaic_0001>
module attributes {stable_mosaic.version = 11 : i64} {
  func.func @probe_kernel(%arg0: i32, %arg1: memref<8x128xf32, #tpu.memory_space<vmem>>, %arg2: memref<8x128xf32, #tpu.memory_space<vmem>>, %arg3: memref<8x128xf32, #tpu.memory_space<vmem>>) attributes {dimension_semantics = [#tpu.dimension_semantics<arbitrary>], iteration_bounds = array<i64: 2>, scalar_prefetch = 0 : i64, scratch_operands = 0 : i64, tpu.core_type = #tpu.core_type<tc>, window_params = [{transform_indices = @transform_0, window_bounds = array<i64: 8, 128>}, {pipeline_mode = #tpu.pipeline_mode<synchronous>, transform_indices = @transform_1, window_bounds = array<i64: 8, 128>}, {transform_indices = @transform_2, window_bounds = array<i64: 8, 128>}]} {
    %c0 = arith.constant 0 : index
    %c0_0 = arith.constant 0 : index
    %0 = vector.load %arg1[%c0, %c0_0] : memref<8x128xf32, #tpu.memory_space<vmem>>, vector<8x128xf32>
    %c0_1 = arith.constant 0 : index
    %c0_2 = arith.constant 0 : index
    %1 = vector.load %arg2[%c0_1, %c0_2] : memref<8x128xf32, #tpu.memory_space<vmem>>, vector<8x128xf32>
    %2 = arith.addf %0, %1 : vector<8x128xf32>
    %c0_3 = arith.constant 0 : index
    %c0_4 = arith.constant 0 : index
    %3 = vector.load %arg3[%c0_3, %c0_4] : memref<8x128xf32, #tpu.memory_space<vmem>>, vector<8x128xf32>
    tpu.vector_store %arg3[%c0_3, %c0_4], %2 {strides = array<i32>} : memref<8x128xf32, #tpu.memory_space<vmem>>, vector<8x128xf32>,
    return
  }
  func.func @transform_0(%arg0: i32) -> (i32, i32) {
    %c0_i32 = arith.constant 0 : i32
    %c0_i32_0 = arith.constant 0 : i32
    return %arg0, %c0_i32 : i32, i32
  }
  func.func @transform_1(%arg0: i32) -> (i32, i32) {
    %c0_i32 = arith.constant 0 : i32
    %c0_i32_0 = arith.constant 0 : i32
    %c0_i32_1 = arith.constant 0 : i32
    return %c0_i32, %c0_i32_0 : i32, i32
  }
  func.func @transform_2(%arg0: i32) -> (i32, i32) {
    %c0_i32 = arith.constant 0 : i32
    %c0_i32_0 = arith.constant 0 : i32
    return %arg0, %c0_i32 : i32, i32
  }
}

module attributes {stable_mosaic.version = 11 : i64} {
  func.func @_shared_net_kernel(%arg0: i32, %arg1: memref<16x24xf32, #tpu.memory_space<vmem>>, %arg2: memref<24x128xbf16, #tpu.memory_space<vmem>>, %arg3: memref<1x128xf32, #tpu.memory_space<vmem>>, %arg4: memref<128x128xbf16, #tpu.memory_space<vmem>>, %arg5: memref<1x128xf32, #tpu.memory_space<vmem>>, %arg6: memref<128x128xbf16, #tpu.memory_space<vmem>>, %arg7: memref<1x128xf32, #tpu.memory_space<vmem>>, %arg8: memref<16x128xf32, #tpu.memory_space<vmem>>) attributes {dimension_semantics = [#tpu.dimension_semantics<parallel>], iteration_bounds = array<i64: 1>, scalar_prefetch = 0 : i64, scratch_operands = 0 : i64, tpu.core_type = #tpu.core_type<tc>, window_params = [{transform_indices = @transform_0, window_bounds = array<i64: 16, 24>}, {pipeline_mode = #tpu.pipeline_mode<synchronous>, transform_indices = @transform_1, window_bounds = array<i64: 24, 128>}, {pipeline_mode = #tpu.pipeline_mode<synchronous>, transform_indices = @transform_2, window_bounds = array<i64: 1, 128>}, {pipeline_mode = #tpu.pipeline_mode<synchronous>, transform_indices = @transform_3, window_bounds = array<i64: 128, 128>}, {pipeline_mode = #tpu.pipeline_mode<synchronous>, transform_indices = @transform_4, window_bounds = array<i64: 1, 128>}, {pipeline_mode = #tpu.pipeline_mode<synchronous>, transform_indices = @transform_5, window_bounds = array<i64: 128, 128>}, {pipeline_mode = #tpu.pipeline_mode<synchronous>, transform_indices = @transform_6, window_bounds = array<i64: 1, 128>}, {transform_indices = @transform_7, window_bounds = array<i64: 16, 128>}]} {
    %c0 = arith.constant 0 : index
    %c0_0 = arith.constant 0 : index
    %0 = vector.load %arg1[%c0, %c0_0] : memref<16x24xf32, #tpu.memory_space<vmem>>, vector<16x24xf32>
    %1 = arith.truncf %0 : vector<16x24xf32> to vector<16x24xbf16>
    %c0_1 = arith.constant 0 : index
    %c0_2 = arith.constant 0 : index
    %2 = vector.load %arg2[%c0_1, %c0_2] : memref<24x128xbf16, #tpu.memory_space<vmem>>, vector<24x128xbf16>
    %cst = arith.constant dense<0.000000e+00> : vector<16x128xf32>
    %3 = tpu.matmul %1, %2, %cst {dimension_numbers = #tpu.dot_dimension_numbers<[1], [0], [0], [1], [0, 0, 1, 1], [], []>} : vector<16x24xbf16>, vector<24x128xbf16>, vector<16x128xf32> -> vector<16x128xf32>
    %c0_3 = arith.constant 0 : index
    %c0_4 = arith.constant 0 : index
    %4 = vector.load %arg3[%c0_3, %c0_4] : memref<1x128xf32, #tpu.memory_space<vmem>>, vector<1x128xf32>
    %5 = vector.broadcast %4 : vector<1x128xf32> to vector<16x128xf32>
    %6 = arith.addf %3, %5 : vector<16x128xf32>
    %cst_5 = arith.constant 0.000000e+00 : f32
    %7 = vector.broadcast %cst_5 : f32 to vector<16x128xf32>
    %8 = arith.maximumf %6, %7 : vector<16x128xf32>
    %9 = arith.truncf %8 : vector<16x128xf32> to vector<16x128xbf16>
    %c0_6 = arith.constant 0 : index
    %c0_7 = arith.constant 0 : index
    %10 = vector.load %arg4[%c0_6, %c0_7] : memref<128x128xbf16, #tpu.memory_space<vmem>>, vector<128x128xbf16>
    %cst_8 = arith.constant dense<0.000000e+00> : vector<16x128xf32>
    %11 = tpu.matmul %9, %10, %cst_8 {dimension_numbers = #tpu.dot_dimension_numbers<[1], [0], [0], [1], [0, 0, 1, 1], [], []>} : vector<16x128xbf16>, vector<128x128xbf16>, vector<16x128xf32> -> vector<16x128xf32>
    %c0_9 = arith.constant 0 : index
    %c0_10 = arith.constant 0 : index
    %12 = vector.load %arg5[%c0_9, %c0_10] : memref<1x128xf32, #tpu.memory_space<vmem>>, vector<1x128xf32>
    %13 = vector.broadcast %12 : vector<1x128xf32> to vector<16x128xf32>
    %14 = arith.addf %11, %13 : vector<16x128xf32>
    %cst_11 = arith.constant 0.000000e+00 : f32
    %15 = vector.broadcast %cst_11 : f32 to vector<16x128xf32>
    %16 = arith.maximumf %14, %15 : vector<16x128xf32>
    %17 = arith.truncf %16 : vector<16x128xf32> to vector<16x128xbf16>
    %c0_12 = arith.constant 0 : index
    %c0_13 = arith.constant 0 : index
    %18 = vector.load %arg6[%c0_12, %c0_13] : memref<128x128xbf16, #tpu.memory_space<vmem>>, vector<128x128xbf16>
    %cst_14 = arith.constant dense<0.000000e+00> : vector<16x128xf32>
    %19 = tpu.matmul %17, %18, %cst_14 {dimension_numbers = #tpu.dot_dimension_numbers<[1], [0], [0], [1], [0, 0, 1, 1], [], []>} : vector<16x128xbf16>, vector<128x128xbf16>, vector<16x128xf32> -> vector<16x128xf32>
    %c0_15 = arith.constant 0 : index
    %c0_16 = arith.constant 0 : index
    %20 = vector.load %arg7[%c0_15, %c0_16] : memref<1x128xf32, #tpu.memory_space<vmem>>, vector<1x128xf32>
    %21 = vector.broadcast %20 : vector<1x128xf32> to vector<16x128xf32>
    %22 = arith.addf %19, %21 : vector<16x128xf32>
    %cst_17 = arith.constant 0.000000e+00 : f32
    %23 = vector.broadcast %cst_17 : f32 to vector<16x128xf32>
    %24 = arith.maximumf %22, %23 : vector<16x128xf32>
    %c0_18 = arith.constant 0 : index
    %c0_19 = arith.constant 0 : index
    %25 = vector.load %arg8[%c0_18, %c0_19] : memref<16x128xf32, #tpu.memory_space<vmem>>, vector<16x128xf32>
    tpu.vector_store %arg8[%c0_18, %c0_19], %24 {strides = array<i32>} : memref<16x128xf32, #tpu.memory_space<vmem>>, vector<16x128xf32>,
    return
  }
  func.func @transform_0(%arg0: i32) -> (i32, i32) {
    %c0_i32 = arith.constant 0 : i32
    %c0_i32_0 = arith.constant 0 : i32
    return %arg0, %c0_i32 : i32, i32
  }
  func.func @transform_1(%arg0: i32) -> (i32, i32) {
    %c0_i32 = arith.constant 0 : i32
    %c0_i32_0 = arith.constant 0 : i32
    %c0_i32_1 = arith.constant 0 : i32
    return %c0_i32, %c0_i32_0 : i32, i32
  }
  func.func @transform_2(%arg0: i32) -> (i32, i32) {
    %c0_i32 = arith.constant 0 : i32
    %c0_i32_0 = arith.constant 0 : i32
    %c0_i32_1 = arith.constant 0 : i32
    return %c0_i32, %c0_i32_0 : i32, i32
  }
  func.func @transform_3(%arg0: i32) -> (i32, i32) {
    %c0_i32 = arith.constant 0 : i32
    %c0_i32_0 = arith.constant 0 : i32
    %c0_i32_1 = arith.constant 0 : i32
    return %c0_i32, %c0_i32_0 : i32, i32
  }
  func.func @transform_4(%arg0: i32) -> (i32, i32) {
    %c0_i32 = arith.constant 0 : i32
    %c0_i32_0 = arith.constant 0 : i32
    %c0_i32_1 = arith.constant 0 : i32
    return %c0_i32, %c0_i32_0 : i32, i32
  }
  func.func @transform_5(%arg0: i32) -> (i32, i32) {
    %c0_i32 = arith.constant 0 : i32
    %c0_i32_0 = arith.constant 0 : i32
    %c0_i32_1 = arith.constant 0 : i32
    return %c0_i32, %c0_i32_0 : i32, i32
  }
  func.func @transform_6(%arg0: i32) -> (i32, i32) {
    %c0_i32 = arith.constant 0 : i32
    %c0_i32_0 = arith.constant 0 : i32
    %c0_i32_1 = arith.constant 0 : i32
    return %c0_i32, %c0_i32_0 : i32, i32
  }
  func.func @transform_7(%arg0: i32) -> (i32, i32) {
    %c0_i32 = arith.constant 0 : i32
    %c0_i32_0 = arith.constant 0 : i32
    return %arg0, %c0_i32 : i32, i32
  }
}

</mosaic_0001>

<llo_original>
// kernel: tpu_custom_call.1
$region0: #{tpu_custom_call.1}
  #allocation0 [shape = 'u32[]', space=smem, size = 0x4, offset = 0x4, fixed_abs, tag = 'smem constant byte address 0x4 - core index']
  #allocation1 [shape = 'u32[72,128]{1,0:T(1,128)}', space=vmem, size = 0x9000, scoped, tag = 'internal scratch']
  %s0 = inlined_call_operand.hbm [shape: f32[16,128], index: 0, kind: input, shape index: {}]
  %s1 = inlined_call_operand.hbm [shape: f32[8,128], index: 1, kind: input, shape index: {}]
  %s2 = inlined_call_operand.hbm [shape: f32[16,128], index: 2, kind: output, shape index: {}]
  %s3 = sld [smem:[#allocation0]]
  $region49: #{tpu_custom_call.1} parent=0
    _
  %s5 = ssub.s32 1, %s3
  %s6 = scalar_select 0, %s5, %s3
  $region1: #{tpu_custom_call.1} parent=0
    #allocation2 [shape = 'u8[8192]{0}', space=vmem, size = 0x2000, scoped, tag = 'input window, operand 0']
    #allocation3 [shape = 's32[2]{0}', space=sflag, size = 0x8, scoped, tag = 'scoped memory for tpu_custom_call.1']
    #allocation4 [shape = 's32[2]{0}', space=sflag, size = 0x8, scoped, tag = 'scoped memory for tpu_custom_call.1']
    #allocation5 [shape = 'u8[4096]{0}', space=vmem, size = 0x1000, scoped, tag = 'input window, operand 1, single buffered']
    #allocation6 [shape = 's32[1]{0}', space=sflag, size = 0x4, scoped, tag = 'scoped memory for tpu_custom_call.1']
    #allocation7 [shape = 'u8[8192]{0}', space=vmem, size = 0x2000, scoped, tag = 'output window, operand 0']
    %7 = vsyncpa [#allocation3], 0
    %s8 = scalar_lea.sflag [#allocation3], 1
    %9 = vsyncpa %s8, 0
    %10 = vsyncpa [#allocation6], 0
    %11 = vsyncpa [#allocation4], 0
    %s12 = scalar_lea.sflag [#allocation4], 1
    %13 = vsyncpa %s12, 0
    loop: start=0, step=1, limit=4
    $region2: #{tpu_custom_call.1} parent=1 // loop_pre_header
      _
    $region3: #{tpu_custom_call.1} parent=1 // loop_header
      %s15 = sphi 0, %s19
      %p16 = scmp.ge.s32.totalorder %s15, 4
      %s25 = sphi 0, %s27
      %s28 = sphi 0, %s25
      %s29 = sphi 0, %s28
      %s45 = sphi 0, %s29
      %s49 = sphi 0, %s49
      %s51 = sphi 0, %s49
      %s52 = sphi 0, %s51
      %s66 = sphi 0, %s52
      %s72 = sphi 0, %s74
      %s75 = sphi 0, %s72
      %s76 = sphi 0, %s75
      %s92 = sphi 0, %s76
    $region4: #{tpu_custom_call.1} parent=1 // loop_header_branch
      %18 = sbr.rel (%p16) target = $region8
    $region5: #{tpu_custom_call.1} parent=1 // loop_body
      %s20 = ssub.s32 %s15, 1
      %s21 = ssub.s32 %s15, 2
      %s22 = sadd.s32 %s15, 1
      %s23 = ssub.s32 %s15, %s22
      %p24 = scmp.eq.s32.totalorder %s23, 0
      %s26 = sadd.s32 %s25, 1
      %s27 = scalar_select %p24, %s25, %s26
      %p30 = pneg %p24
      %p31 = scmp.eq.s32.totalorder %s15, 1
      %p32 = por %p30, %p31
      %p33 = scmp.ne.s32.totalorder %s25, %s28
      %p34 = scmp.eq.s32.totalorder %s15, 0
      %p35 = por %p33, %p34
      %p36 = scmp.ne.s32.totalorder %s25, %s28
      %p37 = scmp.eq.s32.totalorder %s20, 1
      %p38 = por %p36, %p37
      %p39 = scmp.ne.s32.totalorder %s28, %s29
      %p40 = scmp.eq.s32.totalorder %s20, 0
      %p41 = por %p39, %p40
      %p42 = scmp.ne.s32.totalorder %s28, %s29
      %p43 = scmp.eq.s32.totalorder %s21, 1
      %p44 = por %p42, %p43
      %p46 = scmp.ne.s32.totalorder %s29, %s45
      %p47 = scmp.eq.s32.totalorder %s21, 0
      %p48 = por %p46, %p47
      %s50 = sadd.s32 %s49, 1
      %p53 = scmp.eq.s32.totalorder %s15, 1
      %p54 = scmp.ne.s32.totalorder %s49, %s51
      %p55 = scmp.eq.s32.totalorder %s15, 0
      %p56 = por %p54, %p55
      %p57 = scmp.ne.s32.totalorder %s49, %s51
      %p58 = scmp.eq.s32.totalorder %s20, 1
      %p59 = por %p57, %p58
      %p60 = scmp.ne.s32.totalorder %s51, %s52
      %p61 = scmp.eq.s32.totalorder %s20, 0
      %p62 = por %p60, %p61
      %p63 = scmp.ne.s32.totalorder %s51, %s52
      %p64 = scmp.eq.s32.totalorder %s21, 1
      %p65 = por %p63, %p64
      %p67 = scmp.ne.s32.totalorder %s52, %s66
      %p68 = scmp.eq.s32.totalorder %s21, 0
      %p69 = por %p67, %p68
      %s70 = ssub.s32 %s15, %s22
      %p71 = scmp.eq.s32.totalorder %s70, 0
      %s73 = sadd.s32 %s72, 1
      %s74 = scalar_select %p71, %s72, %s73
      %p77 = pneg %p71
      %p78 = scmp.eq.s32.totalorder %s15, 1
      %p79 = por %p77, %p78
      %p80 = scmp.ne.s32.totalorder %s72, %s75
      %p81 = scmp.eq.s32.totalorder %s15, 0
      %p82 = por %p80, %p81
      %p83 = scmp.ne.s32.totalorder %s72, %s75
      %p84 = scmp.eq.s32.totalorder %s20, 1
      %p85 = por %p83, %p84
      %p86 = scmp.ne.s32.totalorder %s75, %s76
      %p87 = scmp.eq.s32.totalorder %s20, 0
      %p88 = por %p86, %p87
      %p89 = scmp.ne.s32.totalorder %s75, %s76
      %p90 = scmp.eq.s32.totalorder %s21, 1
      %p91 = por %p89, %p90
      %p93 = scmp.ne.s32.totalorder %s76, %s92
      %p94 = scmp.eq.s32.totalorder %s21, 0
      %p95 = por %p93, %p94
      %p96 = scmp.le.s32.totalorder 1, %s15
      %p97 = scmp.lt.s32.totalorder %s15, 3
      %p98 = pnand %p96, %p97
      %p99 = pneg %p98
      // Predicated region
      $region9: #{tpu_custom_call.1} parent=5 // pred_check
        _
      $region10: #{tpu_custom_call.1} parent=5 // pred_check_branch
        %101 = sbr.rel (%p98) target = $region12
      $region11: #{tpu_custom_call.1} parent=5 // pred_region
        %s102 = ssub.s32 %s15, 1
        // Predicated region
        $region13: #{tpu_custom_call.1} parent=11 // pred_check
          %p103 = pneg %p62
        $region14: #{tpu_custom_call.1} parent=11 // pred_check_branch
          %105 = sbr.rel (%p103) target = $region16
        $region15: #{tpu_custom_call.1} parent=11 // pred_region
          %107 = vsyncadd [#allocation6], 0
          %s109 = sshll.u32 %s1, 4
          %s110 = int_to_ptr.hbm [resolvable:$true] %s109
          %s111 = sshll.u32 [#allocation5], 4
          %s112 = int_to_ptr.vmem [resolvable:$true] %s111
          %114 = dma.hbm_to_vmem [thread:$0]  %s110, 128, %s112, [#allocation6]
        $region16: #{tpu_custom_call.1} parent=11 // pred_fallthru
          _
      $region12: #{tpu_custom_call.1} parent=5 // pred_fallthru
        _
      %p115 = scmp.lt.s32.totalorder %s15, 2
      // Predicated region
      $region17: #{tpu_custom_call.1} parent=5 // pred_check
        %p116 = pneg %p115
      $region18: #{tpu_custom_call.1} parent=5 // pred_check_branch
        %118 = sbr.rel (%p116) target = $region20
      $region19: #{tpu_custom_call.1} parent=5 // pred_region
        // Predicated region
        $region21: #{tpu_custom_call.1} parent=19 // pred_check
          %p119 = pneg %p35
        $region22: #{tpu_custom_call.1} parent=19 // pred_check_branch
          %121 = sbr.rel (%p119) target = $region24
        $region23: #{tpu_custom_call.1} parent=19 // pred_region
          %s122 = sand.u32 %s25, 1
          %s123 = scalar_lea.sflag [#allocation3], %s122
          %s124 = sand.u32 %s25, 1
          %s125 = smul.addr %s124, 8
          %s126 = scalar_lea.vmem [#allocation2], %s125
          %128 = vsyncadd %s123, 0
          %s129 = smul.addr %s15, 8
          %s130 = scalar_lea.hbm %s0, %s129
          %s132 = sshll.u32 %s130, 4
          %s133 = int_to_ptr.hbm [resolvable:$true] %s132
          %s134 = sshll.u32 %s126, 4
          %s135 = int_to_ptr.vmem [resolvable:$true] %s134
          %137 = dma.hbm_to_vmem [thread:$0]  %s133, 128, %s135, %s123
        $region24: #{tpu_custom_call.1} parent=19 // pred_fallthru
          _
      $region20: #{tpu_custom_call.1} parent=5 // pred_fallthru
        _
      %p138 = scmp.le.s32.totalorder 1, %s15
      %p139 = scmp.lt.s32.totalorder %s15, 3
      %p140 = pnand %p138, %p139
      %p141 = pneg %p140
      // Predicated region
      $region25: #{tpu_custom_call.1} parent=5 // pred_check
        _
      $region26: #{tpu_custom_call.1} parent=5 // pred_check_branch
        %143 = sbr.rel (%p140) target = $region28
      $region27: #{tpu_custom_call.1} parent=5 // pred_region
        %s144 = ssub.s32 %s15, 1
        %s145 = sand.u32 %s28, 1
        %s146 = scalar_lea.sflag [#allocation3], %s145
        %s147 = sand.u32 %s28, 1
        %s148 = smul.addr %s147, 8
        %s149 = scalar_lea.vmem [#allocation2], %s148
        // Predicated region
        $region29: #{tpu_custom_call.1} parent=27 // pred_check
          %p150 = pneg %p41
        $region30: #{tpu_custom_call.1} parent=27 // pred_check_branch
          %152 = sbr.rel (%p150) target = $region32
        $region31: #{tpu_custom_call.1} parent=27 // pred_region
          %154 = dma.done %s146, 128
        $region32: #{tpu_custom_call.1} parent=27 // pred_fallthru
          _
        // Predicated region
        $region33: #{tpu_custom_call.1} parent=27 // pred_check
          %p155 = pneg %p62
        $region34: #{tpu_custom_call.1} parent=27 // pred_check_branch
          %157 = sbr.rel (%p155) target = $region36
        $region35: #{tpu_custom_call.1} parent=27 // pred_region
          %159 = dma.done [#allocation6], 128
        $region36: #{tpu_custom_call.1} parent=27 // pred_fallthru
          _
        %s160 = sand.u32 %s28, 1
        %s161 = scalar_lea.sflag [#allocation3], %s160
        %s162 = sand.u32 %s28, 1
        %s163 = smul.addr %s162, 8
        %s164 = scalar_lea.vmem [#allocation2], %s163
        %p165 = pneg %p41
        %p166 = pneg %p38
        %p167 = pneg %p62
        %p168 = pneg %p59
        %p169 = pneg %p88
        %p170 = pneg %p85
        %s171 = sand.u32 %s75, 1
        %s172 = scalar_lea.sflag [#allocation4], %s171
        %s173 = sand.u32 %s75, 1
        %s174 = smul.addr %s173, 8
        %s175 = scalar_lea.vmem [#allocation7], %s174
        %v176 = vld [vmem:[%s149] sm:$0xff]
        %v177 = vld [vmem:[#allocation5] sm:$0xff]
        %v178 = vadd.f32 %v176, %v177
        %179 = vst [vmem:[%s175] sm:$0xff] %v178
        %s180 = sand.u32 %s75, 1
        %s181 = scalar_lea.sflag [#allocation4], %s180
        %s182 = sand.u32 %s75, 1
        %s183 = smul.addr %s182, 8
        %s184 = scalar_lea.vmem [#allocation7], %s183
        // Predicated region
        $region37: #{tpu_custom_call.1} parent=27 // pred_check
          %p185 = pneg %p85
        $region38: #{tpu_custom_call.1} parent=27 // pred_check_branch
          %187 = sbr.rel (%p185) target = $region40
        $region39: #{tpu_custom_call.1} parent=27 // pred_region
          %189 = vsyncadd %s181, 0
          %s190 = smul.addr %s20, 8
          %s191 = scalar_lea.hbm %s2, %s190
          %s193 = sshll.u32 %s184, 4
          %s194 = int_to_ptr.vmem [resolvable:$true] %s193
          %s195 = sshll.u32 %s191, 4
          %s196 = int_to_ptr.hbm [resolvable:$true] %s195
          %198 = dma.vmem_to_hbm [thread:$0]  %s194, 128, %s196, %s181
        $region40: #{tpu_custom_call.1} parent=27 // pred_fallthru
          _
      $region28: #{tpu_custom_call.1} parent=5 // pred_fallthru
        _
      %p199 = scmp.le.s32.totalorder 2, %s15
      // Predicated region
      $region41: #{tpu_custom_call.1} parent=5 // pred_check
        %p200 = pneg %p199
      $region42: #{tpu_custom_call.1} parent=5 // pred_check_branch
        %202 = sbr.rel (%p200) target = $region44
      $region43: #{tpu_custom_call.1} parent=5 // pred_region
        %s203 = ssub.s32 %s15, 2
        // Predicated region
        $region45: #{tpu_custom_call.1} parent=43 // pred_check
          %p204 = pneg %p91
        $region46: #{tpu_custom_call.1} parent=43 // pred_check_branch
          %206 = sbr.rel (%p204) target = $region48
        $region47: #{tpu_custom_call.1} parent=43 // pred_region
          %s207 = sand.u32 %s76, 1
          %s208 = scalar_lea.sflag [#allocation4], %s207
          %s209 = sand.u32 %s76, 1
          %s210 = smul.addr %s209, 8
          %s211 = scalar_lea.vmem [#allocation7], %s210
          %213 = dma.done %s208, 128
        $region48: #{tpu_custom_call.1} parent=43 // pred_fallthru
          _
      $region44: #{tpu_custom_call.1} parent=5 // pred_fallthru
        _
    $region6: #{tpu_custom_call.1} parent=1 // loop_footer
      %s19 = sadd.s32 1, %s15
    $region7: #{tpu_custom_call.1} parent=1 // loop_footer_branch
      %14 = sbr.rel target = $region3
    $region8: #{tpu_custom_call.1} parent=1 // loop_exit
      _
    %214 = vsyncpa [#allocation3], 1
    %s215 = scalar_lea.sflag [#allocation3], 1
    %216 = vsyncpa %s215, 1
    %217 = vsyncpa [#allocation6], 1
    %218 = vsyncpa [#allocation4], 1
    %s219 = scalar_lea.sflag [#allocation4], 1
    %220 = vsyncpa %s219, 1

// kernel: tpu_custom_call.1
$region0: #{tpu_custom_call.1}
  #allocation0 [shape = 'u32[]', space=smem, size = 0x4, offset = 0x4, fixed_abs, tag = 'smem constant byte address 0x4 - core index']
  #allocation1 [shape = 'u32[72,128]{1,0:T(1,128)}', space=vmem, size = 0x9000, scoped, tag = 'internal scratch']
  %s0 = inlined_call_operand.hbm [shape: f32[12,24], index: 0, kind: input, shape index: {}]
  %s1 = inlined_call_operand.hbm [shape: bf16[24,128], index: 1, kind: input, shape index: {}]
  %s2 = inlined_call_operand.vmem [shape: f32[1,128], index: 2, kind: input, shape index: {}]
  %s3 = inlined_call_operand.hbm [shape: bf16[128,128], index: 3, kind: input, shape index: {}]
  %s4 = inlined_call_operand.vmem [shape: f32[1,128], index: 4, kind: input, shape index: {}]
  %s5 = inlined_call_operand.hbm [shape: bf16[128,128], index: 5, kind: input, shape index: {}]
  %s6 = inlined_call_operand.vmem [shape: f32[1,128], index: 6, kind: input, shape index: {}]
  %s7 = inlined_call_operand.hbm [shape: f32[12,128], index: 7, kind: output, shape index: {}]
  %s8 = sld [smem:[#allocation0]]
  $region54: #{tpu_custom_call.1} parent=0
    _
  %s10 = ssub.s32 1, %s8
  %s11 = scalar_select 0, %s10, %s8
  $region1: #{tpu_custom_call.1} parent=0
    #allocation2 [shape = 'u8[8192]{0}', space=vmem, size = 0x2000, scoped, tag = 'input window, operand 0, single buffered']
    #allocation3 [shape = 's32[1]{0}', space=sflag, size = 0x4, scoped, tag = 'scoped memory for tpu_custom_call.1']
    #allocation4 [shape = 's32[1]{0}', space=sflag, size = 0x4, scoped, tag = 'scoped memory for tpu_custom_call.1']
    #allocation5 [shape = 'u8[6144]{0}', space=vmem, size = 0x1800, scoped, tag = 'input window, operand 1, single buffered']
    #allocation6 [shape = 's32[1]{0}', space=sflag, size = 0x4, scoped, tag = 'scoped memory for tpu_custom_call.1']
    #allocation7 [shape = 'u8[32768]{0}', space=vmem, size = 0x8000, scoped, tag = 'input window, operand 3, single buffered']
    #allocation8 [shape = 'u8[32768]{0}', space=vmem, size = 0x8000, scoped, tag = 'input window, operand 5, single buffered']
    #allocation9 [shape = 's32[1]{0}', space=sflag, size = 0x4, scoped, tag = 'scoped memory for tpu_custom_call.1']
    #allocation10 [shape = 'u8[8192]{0}', space=vmem, size = 0x2000, scoped, tag = 'output window, operand 0, single buffered']
    %12 = vsyncpa [#allocation3], 0
    %13 = vsyncpa [#allocation6], 0
    %14 = vsyncpa [#allocation9], 0
    %15 = vsyncpa [#allocation4], 0
    // Predicated region
    $region2: #{tpu_custom_call.1} parent=1 // pred_check
      _
    $region3: #{tpu_custom_call.1} parent=1 // pred_check_branch
      %17 = sbr.rel (0) target = $region5
    $region4: #{tpu_custom_call.1} parent=1 // pred_region
      %19 = vsyncadd [#allocation3], 0
      %s20 = sshll.u32 %s0, 4
      %s21 = int_to_ptr.hbm [resolvable:$true] %s20
      %s22 = sshll.u32 [#allocation2], 4
      %s23 = int_to_ptr.vmem [resolvable:$true] %s22
      %28 = dma.hbm_to_vmem [thread:$0]  %s21, 256, %s23, [#allocation3], 128, 128, 8
    $region5: #{tpu_custom_call.1} parent=1 // pred_fallthru
      _
    // Predicated region
    $region6: #{tpu_custom_call.1} parent=1 // pred_check
      _
    $region7: #{tpu_custom_call.1} parent=1 // pred_check_branch
      %30 = sbr.rel (0) target = $region9
    $region8: #{tpu_custom_call.1} parent=1 // pred_region
      %32 = vsyncadd [#allocation6], 0
      %s33 = sshll.u32 %s1, 4
      %s34 = int_to_ptr.hbm [resolvable:$true] %s33
      %s35 = sshll.u32 [#allocation5], 4
      %s36 = int_to_ptr.vmem [resolvable:$true] %s35
      %41 = dma.hbm_to_vmem [thread:$0]  %s34, 192, %s36, [#allocation6], 64, 64, 4
    $region9: #{tpu_custom_call.1} parent=1 // pred_fallthru
      _
    // Predicated region
    $region10: #{tpu_custom_call.1} parent=1 // pred_check
      _
    $region11: #{tpu_custom_call.1} parent=1 // pred_check_branch
      %43 = sbr.rel (0) target = $region13
    $region12: #{tpu_custom_call.1} parent=1 // pred_region
      _
    $region13: #{tpu_custom_call.1} parent=1 // pred_fallthru
      _
    // Predicated region
    $region14: #{tpu_custom_call.1} parent=1 // pred_check
      _
    $region15: #{tpu_custom_call.1} parent=1 // pred_check_branch
      %45 = sbr.rel (0) target = $region17
    $region16: #{tpu_custom_call.1} parent=1 // pred_region
      %47 = vsyncadd [#allocation6], 0
      %s48 = sshll.u32 %s3, 4
      %s49 = int_to_ptr.hbm [resolvable:$true] %s48
      %s50 = sshll.u32 [#allocation7], 4
      %s51 = int_to_ptr.vmem [resolvable:$true] %s50
      %56 = dma.hbm_to_vmem [thread:$0]  %s49, 1024, %s51, [#allocation6], 64, 64, 4
    $region17: #{tpu_custom_call.1} parent=1 // pred_fallthru
      _
    // Predicated region
    $region18: #{tpu_custom_call.1} parent=1 // pred_check
      _
    $region19: #{tpu_custom_call.1} parent=1 // pred_check_branch
      %58 = sbr.rel (0) target = $region21
    $region20: #{tpu_custom_call.1} parent=1 // pred_region
      _
    $region21: #{tpu_custom_call.1} parent=1 // pred_fallthru
      _
    // Predicated region
    $region22: #{tpu_custom_call.1} parent=1 // pred_check
      _
    $region23: #{tpu_custom_call.1} parent=1 // pred_check_branch
      %60 = sbr.rel (0) target = $region25
    $region24: #{tpu_custom_call.1} parent=1 // pred_region
      %62 = vsyncadd [#allocation9], 0
      %s63 = sshll.u32 %s5, 4
      %s64 = int_to_ptr.hbm [resolvable:$true] %s63
      %s65 = sshll.u32 [#allocation8], 4
      %s66 = int_to_ptr.vmem [resolvable:$true] %s65
      %71 = dma.hbm_to_vmem [thread:$0]  %s64, 1024, %s66, [#allocation9], 64, 64, 4
    $region25: #{tpu_custom_call.1} parent=1 // pred_fallthru
      _
    // Predicated region
    $region26: #{tpu_custom_call.1} parent=1 // pred_check
      _
    $region27: #{tpu_custom_call.1} parent=1 // pred_check_branch
      %73 = sbr.rel (0) target = $region29
    $region28: #{tpu_custom_call.1} parent=1 // pred_region
      _
    $region29: #{tpu_custom_call.1} parent=1 // pred_fallthru
      _
    // Predicated region
    $region30: #{tpu_custom_call.1} parent=1 // pred_check
      _
    $region31: #{tpu_custom_call.1} parent=1 // pred_check_branch
      %75 = sbr.rel (0) target = $region33
    $region32: #{tpu_custom_call.1} parent=1 // pred_region
      %77 = dma.done [#allocation3], 256
    $region33: #{tpu_custom_call.1} parent=1 // pred_fallthru
      _
    // Predicated region
    $region34: #{tpu_custom_call.1} parent=1 // pred_check
      _
    $region35: #{tpu_custom_call.1} parent=1 // pred_check_branch
      %79 = sbr.rel (0) target = $region37
    $region36: #{tpu_custom_call.1} parent=1 // pred_region
      %81 = dma.done [#allocation6], 192
    $region37: #{tpu_custom_call.1} parent=1 // pred_fallthru
      _
    // Predicated region
    $region38: #{tpu_custom_call.1} parent=1 // pred_check
      _
    $region39: #{tpu_custom_call.1} parent=1 // pred_check_branch
      %83 = sbr.rel (0) target = $region41
    $region40: #{tpu_custom_call.1} parent=1 // pred_region
      %85 = dma.done [#allocation6], 1024
    $region41: #{tpu_custom_call.1} parent=1 // pred_fallthru
      _
    // Predicated region
    $region42: #{tpu_custom_call.1} parent=1 // pred_check
      _
    $region43: #{tpu_custom_call.1} parent=1 // pred_check_branch
      %87 = sbr.rel (0) target = $region45
    $region44: #{tpu_custom_call.1} parent=1 // pred_region
      %89 = dma.done [#allocation9], 1024
    $region45: #{tpu_custom_call.1} parent=1 // pred_fallthru
      _
    %v91 = vld [vmem:[#allocation2] sm:$0xff]
    %v92 = vld [vmem:[#allocation2 + $0x8] sm:$0xff]
    %v93 = vpack.c.bf16 %v92, %v91
    %v94 = vld [vmem:[#allocation5] sm:$0xf]
    %v95 = vld [vmem:[#allocation5 + $0x4] sm:$0xf]
    %v96 = vld [vmem:[#allocation5 + $0x8] sm:$0xf]
    %v97 = vld [vmem:[%s2] sm:$0x1]
    %v99 = vperm.slane %v97, 0
    %v104 = vunpack.c.l.b16 %v94
    %v105 = vunpack.c.l.b16 %v95
    %v106 = vunpack.c.l.b16 %v96
    %v107 = vpack.c.b16 %v105, %v104
    %v108 = vpack.c.b16 %v106, %v106
    %vm110 = vcmask 195584
    %v112 = vsel %vm110, %v93, 0
    %vm114 = vcmask 1043456
    %v116 = vsel %vm114, %v108, 0
    %118 = vmatpush.bf16.msra.mxu0 0
    %119 = vmatpush.bf16.msra.mxu0 0
    %120 = vmatpush.bf16.msra.mxu0 0
    %121 = vmatpush.bf16.msra.mxu0 0
    %122 = vmatpush.bf16.msra.mxu0 0
    %123 = vmatpush.bf16.msra.mxu0 0
    %124 = vmatpush.bf16.msra.mxu0 %v116
    %125 = vmatpush.bf16.msra.mxu0 %v107
    %126 = vmatmul.bf16.gmra.mxu0 %v112
    %v127 = vpop.f32.mrf.mxu0
    %v128 = vadd.f32 %v99, %v127
    %v129 = vpop.f32.mrf.mxu0
    %v130 = vadd.f32 %v99, %v129
    %131 = vdwg.mxu0
    %v132 = vmax.f32 %v128, 0.0
    %v133 = vmax.f32 %v130, 0.0
    %v134 = vpack.c.bf16 %v133, %v132
    %v135 = vld [vmem:[#allocation7] sm:$0xf]
    %v136 = vld [vmem:[#allocation7 + $0x4] sm:$0xf]
    %v137 = vld [vmem:[#allocation7 + $0x8] sm:$0xf]
    %v138 = vld [vmem:[#allocation7 + $0xc] sm:$0xf]
    %v139 = vld [vmem:[#allocation7 + $0x10] sm:$0xf]
    %v140 = vld [vmem:[#allocation7 + $0x14] sm:$0xf]
    %v141 = vld [vmem:[#allocation7 + $0x18] sm:$0xf]
    %v142 = vld [vmem:[#allocation7 + $0x1c] sm:$0xf]
    %v143 = vld [vmem:[#allocation7 + $0x20] sm:$0xf]
    %v144 = vld [vmem:[#allocation7 + $0x24] sm:$0xf]
    %v145 = vld [vmem:[#allocation7 + $0x28] sm:$0xf]
    %v146 = vld [vmem:[#allocation7 + $0x2c] sm:$0xf]
    %v147 = vld [vmem:[#allocation7 + $0x30] sm:$0xf]
    %v148 = vld [vmem:[#allocation7 + $0x34] sm:$0xf]
    %v149 = vld [vmem:[#allocation7 + $0x38] sm:$0xf]
    %v150 = vld [vmem:[#allocation7 + $0x3c] sm:$0xf]
    %v151 = vld [vmem:[%s4] sm:$0x1]
    %v153 = vperm.slane %v151, 0
    %v171 = vunpack.c.l.b16 %v135
    %v172 = vunpack.c.l.b16 %v136
    %v173 = vunpack.c.l.b16 %v137
    %v174 = vunpack.c.l.b16 %v138
    %v175 = vunpack.c.l.b16 %v139
    %v176 = vunpack.c.l.b16 %v140
    %v177 = vunpack.c.l.b16 %v141
    %v178 = vunpack.c.l.b16 %v142
    %v179 = vunpack.c.l.b16 %v143
    %v180 = vunpack.c.l.b16 %v144
    %v181 = vunpack.c.l.b16 %v145
    %v182 = vunpack.c.l.b16 %v146
    %v183 = vunpack.c.l.b16 %v147
    %v184 = vunpack.c.l.b16 %v148
    %v185 = vunpack.c.l.b16 %v149
    %v186 = vunpack.c.l.b16 %v150
    %v187 = vpack.c.b16 %v172, %v171
    %v188 = vpack.c.b16 %v174, %v173
    %v189 = vpack.c.b16 %v176, %v175
    %v190 = vpack.c.b16 %v178, %v177
    %v191 = vpack.c.b16 %v180, %v179
    %v192 = vpack.c.b16 %v182, %v181
    %v193 = vpack.c.b16 %v184, %v183
    %v194 = vpack.c.b16 %v186, %v185
    %203 = vmatpush.bf16.msra.mxu0 %v194
    %204 = vmatpush.bf16.msra.mxu0 %v193
    %205 = vmatpush.bf16.msra.mxu0 %v192
    %206 = vmatpush.bf16.msra.mxu0 %v191
    %207 = vmatpush.bf16.msra.mxu0 %v190
    %208 = vmatpush.bf16.msra.mxu0 %v189
    %209 = vmatpush.bf16.msra.mxu0 %v188
    %210 = vmatpush.bf16.msra.mxu0 %v187
    %211 = vmatmul.bf16.gmra.mxu0 %v134
    %v212 = vpop.f32.mrf.mxu0
    %v213 = vadd.f32 %v153, %v212
    %v214 = vpop.f32.mrf.mxu0
    %v215 = vadd.f32 %v153, %v214
    %216 = vdwg.mxu0
    %v217 = vmax.f32 %v213, 0.0
    %v218 = vmax.f32 %v215, 0.0
    %v219 = vpack.c.bf16 %v218, %v217
    %v220 = vld [vmem:[#allocation8] sm:$0xf]
    %v221 = vld [vmem:[#allocation8 + $0x4] sm:$0xf]
    %v222 = vld [vmem:[#allocation8 + $0x8] sm:$0xf]
    %v223 = vld [vmem:[#allocation8 + $0xc] sm:$0xf]
    %v224 = vld [vmem:[#allocation8 + $0x10] sm:$0xf]
    %v225 = vld [vmem:[#allocation8 + $0x14] sm:$0xf]
    %v226 = vld [vmem:[#allocation8 + $0x18] sm:$0xf]
    %v227 = vld [vmem:[#allocation8 + $0x1c] sm:$0xf]
    %v228 = vld [vmem:[#allocation8 + $0x20] sm:$0xf]
    %v229 = vld [vmem:[#allocation8 + $0x24] sm:$0xf]
    %v230 = vld [vmem:[#allocation8 + $0x28] sm:$0xf]
    %v231 = vld [vmem:[#allocation8 + $0x2c] sm:$0xf]
    %v232 = vld [vmem:[#allocation8 + $0x30] sm:$0xf]
    %v233 = vld [vmem:[#allocation8 + $0x34] sm:$0xf]
    %v234 = vld [vmem:[#allocation8 + $0x38] sm:$0xf]
    %v235 = vld [vmem:[#allocation8 + $0x3c] sm:$0xf]
    %v236 = vld [vmem:[%s6] sm:$0x1]
    %v238 = vperm.slane %v236, 0
    %v256 = vunpack.c.l.b16 %v220
    %v257 = vunpack.c.l.b16 %v221
    %v258 = vunpack.c.l.b16 %v222
    %v259 = vunpack.c.l.b16 %v223
    %v260 = vunpack.c.l.b16 %v224
    %v261 = vunpack.c.l.b16 %v225
    %v262 = vunpack.c.l.b16 %v226
    %v263 = vunpack.c.l.b16 %v227
    %v264 = vunpack.c.l.b16 %v228
    %v265 = vunpack.c.l.b16 %v229
    %v266 = vunpack.c.l.b16 %v230
    %v267 = vunpack.c.l.b16 %v231
    %v268 = vunpack.c.l.b16 %v232
    %v269 = vunpack.c.l.b16 %v233
    %v270 = vunpack.c.l.b16 %v234
    %v271 = vunpack.c.l.b16 %v235
    %v272 = vpack.c.b16 %v257, %v256
    %v273 = vpack.c.b16 %v259, %v258
    %v274 = vpack.c.b16 %v261, %v260
    %v275 = vpack.c.b16 %v263, %v262
    %v276 = vpack.c.b16 %v265, %v264
    %v277 = vpack.c.b16 %v267, %v266
    %v278 = vpack.c.b16 %v269, %v268
    %v279 = vpack.c.b16 %v271, %v270
    %288 = vmatpush.bf16.msra.mxu0 %v279
    %289 = vmatpush.bf16.msra.mxu0 %v278
    %290 = vmatpush.bf16.msra.mxu0 %v277
    %291 = vmatpush.bf16.msra.mxu0 %v276
    %292 = vmatpush.bf16.msra.mxu0 %v275
    %293 = vmatpush.bf16.msra.mxu0 %v274
    %294 = vmatpush.bf16.msra.mxu0 %v273
    %295 = vmatpush.bf16.msra.mxu0 %v272
    %296 = vmatmul.bf16.gmra.mxu0 %v219
    %v297 = vpop.f32.mrf.mxu0
    %v298 = vadd.f32 %v238, %v297
    %v299 = vpop.f32.mrf.mxu0
    %v300 = vadd.f32 %v238, %v299
    %301 = vdwg.mxu0
    %v302 = vmax.f32 %v298, 0.0
    %v303 = vmax.f32 %v300, 0.0
    %304 = vst [vmem:[#allocation10] sm:$0xff] %v302
    %305 = vst [vmem:[#allocation10 + $0x8] sm:$0xff] %v303
    // Predicated region
    $region46: #{tpu_custom_call.1} parent=1 // pred_check
      _
    $region47: #{tpu_custom_call.1} parent=1 // pred_check_branch
      %307 = sbr.rel (0) target = $region49
    $region48: #{tpu_custom_call.1} parent=1 // pred_region
      %309 = vsyncadd [#allocation4], 0
      %s310 = sshll.u32 [#allocation10], 4
      %s311 = int_to_ptr.vmem [resolvable:$true] %s310
      %s312 = sshll.u32 %s7, 4
      %s313 = int_to_ptr.hbm [resolvable:$true] %s312
      %318 = dma.vmem_to_hbm [thread:$0]  %s311, 256, %s313, [#allocation4], 128, 128, 8
    $region49: #{tpu_custom_call.1} parent=1 // pred_fallthru
      _
    // Predicated region
    $region50: #{tpu_custom_call.1} parent=1 // pred_check
      _
    $region51: #{tpu_custom_call.1} parent=1 // pred_check_branch
      %320 = sbr.rel (0) target = $region53
    $region52: #{tpu_custom_call.1} parent=1 // pred_region
      %322 = dma.done [#allocation4], 256
    $region53: #{tpu_custom_call.1} parent=1 // pred_fallthru
      _
    %323 = vsyncpa [#allocation3], 1
    %324 = vsyncpa [#allocation6], 1
    %325 = vsyncpa [#allocation9], 1
    %326 = vsyncpa [#allocation4], 1

</llo_original>
